<compile_context>
chip_gen: v6e
topology: v6e:2x2x1
jax: 0.10.0
libtpu: 0.0.40
codegen_flags: <defaults>
</compile_context>

<pallas_src>
import jax
import jax.numpy as jnp
from jax.experimental import pallas as pl
from jax.experimental.pallas import tpu as pltpu


def _ca_kernel(x_ref, w_ref, b_ref, z_ref, zca_ref, h_ref):
    # x_ref: (TB, D_in)      bf16 (or f32) speech embeddings for this batch tile
    # w_ref: (2, D_in, 2E)   stacked [value | gate] halves of the linear weight
    # b_ref: (2, 1, 2E)      stacked bias halves (f32)
    # z_ref: (TB, E)         standard-normal noise (f32)
    # zca_ref: (TB, E)  h_ref: (TB, 2E)
    E = zca_ref.shape[1]

    x = x_ref[...]
    # Two MXU matmuls (value half, gate half), f32 accumulation. No cross-lane
    # slicing of a fused (TB, 4E) result is needed.
    a = jnp.dot(x, w_ref[0], preferred_element_type=jnp.float32) + b_ref[0]
    g = jnp.dot(x, w_ref[1], preferred_element_type=jnp.float32) + b_ref[1]
    h = a * jax.nn.sigmoid(g)                       # GLU(dim=1), f32, (TB, 2E)

    mu = h[:, :E]
    std = jnp.exp(0.5 * h[:, E:])                   # EUP exp
    zca_ref[...] = (mu + std * z_ref[...]).astype(zca_ref.dtype)
    h_ref[...] = h.astype(h_ref.dtype)              # mu/logvar sliced in wrapper


def conditioning_augmentation(x, w, b, z, *,
                              matmul_dtype=jnp.bfloat16,
                              batch_block=None):
    """Conditioning augmentation forward.

    x: (B, D_in) f32      speech embedding
    w: (D_in, 4E) f32     nn.Linear weight, pre-transposed (weight.T)
    b: (4E,) f32          nn.Linear bias
    z: (B, E) f32         reparameterization noise (torch.randn equivalent)
    Returns (z_ca, mu, logvar), each (B, E) f32.
    """
    B, D_in = x.shape
    four_e = w.shape[1]
    E = four_e // 4
    two_e = 2 * E

    # --- wrapper-side layout plumbing ------------------------------------
    # Stack GLU value/gate column halves -> kernel avoids lane slicing of y.
    w_stacked = jnp.stack([w[:, :two_e], w[:, two_e:]], axis=0).astype(matmul_dtype)
    b_stacked = jnp.stack([b[:two_e], b[two_e:]], axis=0).reshape(2, 1, two_e)
    b_stacked = b_stacked.astype(jnp.float32)
    x_in = x.astype(matmul_dtype)
    z_in = z.astype(jnp.float32)

    # --- batch tiling (parallel grid axis for multi-TensorCore chips) ----
    if batch_block is None:
        batch_block = B if B <= 256 else 256
    Bp = pl.cdiv(B, batch_block) * batch_block
    if Bp != B:
        pad = Bp - B
        x_in = jnp.pad(x_in, ((0, pad), (0, 0)))
        z_in = jnp.pad(z_in, ((0, pad), (0, 0)))
    nb = Bp // batch_block

    itemsize = jnp.dtype(matmul_dtype).itemsize
    cost = pl.CostEstimate(
        flops=2 * Bp * D_in * four_e,
        transcendentals=Bp * (two_e + E),                 # sigmoid(2E) + exp(E) per row
        bytes_accessed=(x_in.size * itemsize + w_stacked.size * itemsize
                        + b_stacked.size * 4 + z_in.size * 4
                        + Bp * E * 4 + Bp * two_e * 4),
    )

    z_ca, h = pl.pallas_call(
        _ca_kernel,
        out_shape=(jax.ShapeDtypeStruct((Bp, E), jnp.float32),      # z_ca
                   jax.ShapeDtypeStruct((Bp, two_e), jnp.float32)), # h = [mu | logvar]
        grid=(nb,),
        in_specs=[
            pl.BlockSpec((batch_block, D_in), lambda i: (i, 0)),
            pl.BlockSpec((2, D_in, two_e), lambda i: (0, 0, 0)),    # resident weight
            pl.BlockSpec((2, 1, two_e), lambda i: (0, 0, 0)),       # resident bias
            pl.BlockSpec((batch_block, E), lambda i: (i, 0)),
        ],
        out_specs=(pl.BlockSpec((batch_block, E), lambda i: (i, 0)),
                   pl.BlockSpec((batch_block, two_e), lambda i: (i, 0))),
        compiler_params=pltpu.CompilerParams(dimension_semantics=("parallel",)),
        cost_estimate=cost,
    )(x_in, w_stacked, b_stacked, z_in)

    z_ca = z_ca[:B]
    h = h[:B]
    mu = h[:, :E]          # free slices, fused by XLA
    logvar = h[:, E:]
    return z_ca, mu, logvar


def _reference(x, w, b, z, matmul_dtype=jnp.bfloat16):
    # Reference uses the same bf16-rounded matmul operands as the kernel so the
    # comparison isolates kernel correctness (not the bf16 rounding choice).
    xb = x.astype(matmul_dtype).astype(jnp.float32)
    wb = w.astype(matmul_dtype).astype(jnp.float32)
    y = jnp.dot(xb, wb, precision=jax.lax.Precision.HIGHEST) + b
    four_e = w.shape[1]
    a, g = y[:, : four_e // 2], y[:, four_e // 2:]
    h = a * jax.nn.sigmoid(g)
    E = four_e // 4
    mu, logvar = h[:, :E], h[:, E:]
    std = jnp.exp(0.5 * logvar)
    return mu + std * z, mu, logvar


if __name__ == "__main__":
    # Small shapes consistent with the module's forward:
    #   batch=8, speech_emb_dim=128, gan_emb_dim=32 (fc output = 4E = 128)
    B, D_IN, E = 8, 128, 32

    key = jax.random.PRNGKey(0)
    k_x, k_w, k_b, k_z = jax.random.split(key, 4)

    x = jax.random.normal(k_x, (B, D_IN), dtype=jnp.float32)
    # nn.Linear(speech_dim, 4E): weight (4E, D_IN) stored pre-transposed as (D_IN, 4E).
    w = jax.random.normal(k_w, (D_IN, 4 * E), dtype=jnp.float32) * (1.0 / jnp.sqrt(D_IN))
    b = jax.random.normal(k_b, (4 * E,), dtype=jnp.float32) * 0.01
    # Reparameterization noise (torch.randn equivalent), drawn deterministically.
    z = jax.random.normal(k_z, (B, E), dtype=jnp.float32)

    z_ca, mu, logvar = conditioning_augmentation(x, w, b, z)
    jax.block_until_ready((z_ca, mu, logvar))

    z_ca_ref, mu_ref, logvar_ref = _reference(x, w, b, z)
    assert jnp.allclose(z_ca, z_ca_ref, atol=1e-3, rtol=1e-3)
    assert jnp.allclose(mu, mu_ref, atol=1e-3, rtol=1e-3)
    assert jnp.allclose(logvar, logvar_ref, atol=1e-3, rtol=1e-3)

    print("KERNEL_OK")
</pallas_src>

<mosaic_0001>
module attributes {stable_mosaic.version = 11 : i64} {
  func.func @_ca_kernel(%arg0: i32, %arg1: memref<8x128xbf16, #tpu.memory_space<vmem>>, %arg2: memref<2x128x64xbf16, #tpu.memory_space<vmem>>, %arg3: memref<2x1x64xf32, #tpu.memory_space<vmem>>, %arg4: memref<8x32xf32, #tpu.memory_space<vmem>>, %arg5: memref<8x32xf32, #tpu.memory_space<vmem>>, %arg6: memref<8x64xf32, #tpu.memory_space<vmem>>) attributes {dimension_semantics = [#tpu.dimension_semantics<parallel>], iteration_bounds = array<i64: 1>, scalar_prefetch = 0 : i64, scratch_operands = 0 : i64, tpu.core_type = #tpu.core_type<tc>, window_params = [{transform_indices = @transform_0, window_bounds = array<i64: 8, 128>}, {pipeline_mode = #tpu.pipeline_mode<synchronous>, transform_indices = @transform_1, window_bounds = array<i64: 2, 128, 64>}, {pipeline_mode = #tpu.pipeline_mode<synchronous>, transform_indices = @transform_2, window_bounds = array<i64: 2, 1, 64>}, {transform_indices = @transform_3, window_bounds = array<i64: 8, 32>}, {transform_indices = @transform_4, window_bounds = array<i64: 8, 32>}, {transform_indices = @transform_5, window_bounds = array<i64: 8, 64>}]} {
    %c0 = arith.constant 0 : index
    %c0_0 = arith.constant 0 : index
    %0 = vector.load %arg1[%c0, %c0_0] : memref<8x128xbf16, #tpu.memory_space<vmem>>, vector<8x128xbf16>
    %c0_1 = arith.constant 0 : index
    %c0_2 = arith.constant 0 : index
    %c0_3 = arith.constant 0 : index
    %1 = vector.load %arg2[%c0_1, %c0_2, %c0_3] : memref<2x128x64xbf16, #tpu.memory_space<vmem>>, vector<1x128x64xbf16>
    %2 = vector.shape_cast %1 : vector<1x128x64xbf16> to vector<128x64xbf16>
    %cst = arith.constant dense<0.000000e+00> : vector<8x64xf32>
    %3 = tpu.matmul %0, %2, %cst {dimension_numbers = #tpu.dot_dimension_numbers<[1], [0], [0], [1], [0, 0, 1, 1], [], []>} : vector<8x128xbf16>, vector<128x64xbf16>, vector<8x64xf32> -> vector<8x64xf32>
    %c0_4 = arith.constant 0 : index
    %c0_5 = arith.constant 0 : index
    %c0_6 = arith.constant 0 : index
    %4 = vector.load %arg3[%c0_4, %c0_5, %c0_6] : memref<2x1x64xf32, #tpu.memory_space<vmem>>, vector<1x1x64xf32>
    %5 = vector.shape_cast %4 : vector<1x1x64xf32> to vector<1x64xf32>
    %6 = vector.broadcast %5 : vector<1x64xf32> to vector<8x64xf32>
    %7 = arith.addf %3, %6 : vector<8x64xf32>
    %c1 = arith.constant 1 : index
    %c0_7 = arith.constant 0 : index
    %c0_8 = arith.constant 0 : index
    %8 = vector.load %arg2[%c1, %c0_7, %c0_8] : memref<2x128x64xbf16, #tpu.memory_space<vmem>>, vector<1x128x64xbf16>
    %9 = vector.shape_cast %8 : vector<1x128x64xbf16> to vector<128x64xbf16>
    %cst_9 = arith.constant dense<0.000000e+00> : vector<8x64xf32>
    %10 = tpu.matmul %0, %9, %cst_9 {dimension_numbers = #tpu.dot_dimension_numbers<[1], [0], [0], [1], [0, 0, 1, 1], [], []>} : vector<8x128xbf16>, vector<128x64xbf16>, vector<8x64xf32> -> vector<8x64xf32>
    %c1_10 = arith.constant 1 : index
    %c0_11 = arith.constant 0 : index
    %c0_12 = arith.constant 0 : index
    %11 = vector.load %arg3[%c1_10, %c0_11, %c0_12] : memref<2x1x64xf32, #tpu.memory_space<vmem>>, vector<1x1x64xf32>
    %12 = vector.shape_cast %11 : vector<1x1x64xf32> to vector<1x64xf32>
    %13 = vector.broadcast %12 : vector<1x64xf32> to vector<8x64xf32>
    %14 = arith.addf %10, %13 : vector<8x64xf32>
    %15 = arith.negf %14 : vector<8x64xf32>
    %16 = math.exp %15 : vector<8x64xf32>
    %cst_13 = arith.constant 1.000000e+00 : f32
    %17 = vector.broadcast %cst_13 : f32 to vector<8x64xf32>
    %18 = arith.addf %17, %16 : vector<8x64xf32>
    %19 = arith.divf %17, %18 : vector<8x64xf32>
    %20 = arith.mulf %7, %19 : vector<8x64xf32>
    %21 = vector.extract_strided_slice %20 {offsets = [0, 0], sizes = [8, 32], strides = [1, 1]} : vector<8x64xf32> to vector<8x32xf32>
    %22 = vector.extract_strided_slice %20 {offsets = [0, 32], sizes = [8, 32], strides = [1, 1]} : vector<8x64xf32> to vector<8x32xf32>
    %cst_14 = arith.constant 5.000000e-01 : f32
    %23 = vector.broadcast %cst_14 : f32 to vector<8x32xf32>
    %24 = arith.mulf %23, %22 : vector<8x32xf32>
    %25 = math.exp %24 : vector<8x32xf32>
    %c0_15 = arith.constant 0 : index
    %c0_16 = arith.constant 0 : index
    %26 = vector.load %arg4[%c0_15, %c0_16] : memref<8x32xf32, #tpu.memory_space<vmem>>, vector<8x32xf32>
    %27 = arith.mulf %25, %26 : vector<8x32xf32>
    %28 = arith.addf %21, %27 : vector<8x32xf32>
    %c0_17 = arith.constant 0 : index
    %c0_18 = arith.constant 0 : index
    %29 = vector.load %arg5[%c0_17, %c0_18] : memref<8x32xf32, #tpu.memory_space<vmem>>, vector<8x32xf32>
    tpu.vector_store %arg5[%c0_17, %c0_18], %28 {strides = array<i32>} : memref<8x32xf32, #tpu.memory_space<vmem>>, vector<8x32xf32>,
    %c0_19 = arith.constant 0 : index
    %c0_20 = arith.constant 0 : index
    %30 = vector.load %arg6[%c0_19, %c0_20] : memref<8x64xf32, #tpu.memory_space<vmem>>, vector<8x64xf32>
    tpu.vector_store %arg6[%c0_19, %c0_20], %20 {strides = array<i32>} : memref<8x64xf32, #tpu.memory_space<vmem>>, vector<8x64xf32>,
    return
  }
  func.func @transform_0(%arg0: i32) -> (i32, i32) {
    %c0_i32 = arith.constant 0 : i32
    %c0_i32_0 = arith.constant 0 : i32
    return %arg0, %c0_i32 : i32, i32
  }
  func.func @transform_1(%arg0: i32) -> (i32, i32, i32) {
    %c0_i32 = arith.constant 0 : i32
    %c0_i32_0 = arith.constant 0 : i32
    %c0_i32_1 = arith.constant 0 : i32
    %c0_i32_2 = arith.constant 0 : i32
    return %c0_i32, %c0_i32_0, %c0_i32_1 : i32, i32, i32
  }
  func.func @transform_2(%arg0: i32) -> (i32, i32, i32) {
    %c0_i32 = arith.constant 0 : i32
    %c0_i32_0 = arith.constant 0 : i32
    %c0_i32_1 = arith.constant 0 : i32
    %c0_i32_2 = arith.constant 0 : i32
    return %c0_i32, %c0_i32_0, %c0_i32_1 : i32, i32, i32
  }
  func.func @transform_3(%arg0: i32) -> (i32, i32) {
    %c0_i32 = arith.constant 0 : i32
    %c0_i32_0 = arith.constant 0 : i32
    return %arg0, %c0_i32 : i32, i32
  }
  func.func @transform_4(%arg0: i32) -> (i32, i32) {
    %c0_i32 = arith.constant 0 : i32
    %c0_i32_0 = arith.constant 0 : i32
    return %arg0, %c0_i32 : i32, i32
  }
  func.func @transform_5(%arg0: i32) -> (i32, i32) {
    %c0_i32 = arith.constant 0 : i32
    %c0_i32_0 = arith.constant 0 : i32
    return %arg0, %c0_i32 : i32, i32
  }
}

</mosaic_0001>

<llo_original>
// kernel: tpu_custom_call.1
$region0: #{tpu_custom_call.1}
  #allocation0 [shape = 'u32[]', space=smem, size = 0x4, offset = 0x4, fixed_abs, tag = 'smem constant byte address 0x4 - core index']
  #allocation1 [shape = 'u32[144,128]{1,0:T(1,128)}', space=vmem, size = 0x12000, scoped, tag = 'internal scratch']
  %s0 = inlined_call_operand.vmem [shape: bf16[8,128], index: 0, kind: input, shape index: {}]
  %s1 = inlined_call_operand.vmem [shape: bf16[2,128,64], index: 1, kind: input, shape index: {}]
  %s2 = inlined_call_operand.vmem [shape: f32[2,1,64], index: 2, kind: input, shape index: {}]
  %s3 = inlined_call_operand.vmem [shape: f32[8,32], index: 3, kind: input, shape index: {}]
  %s4 = inlined_call_operand.hbm [shape: f32[8,32], index: 4, kind: output, shape index: {0}]
  %s5 = inlined_call_operand.hbm [shape: f32[8,64], index: 5, kind: output, shape index: {1}]
  %6 = xla_tuple %s4, %s5
  %s7 = sld [smem:[#allocation0]]
  $region34: #{tpu_custom_call.1} parent=0
    _
  %s9 = ssub.s32 1, %s7
  %s10 = scalar_select 0, %s9, %s7
  $region1: #{tpu_custom_call.1} parent=0
    #allocation2 [shape = 'u8[4096]{0}', space=vmem, size = 0x1000, scoped, tag = 'output window, operand 0, single buffered']
    #allocation3 [shape = 's32[1]{0}', space=sflag, size = 0x4, scoped, tag = 'scoped memory for tpu_custom_call.1']
    #allocation4 [shape = 'u8[4096]{0}', space=vmem, size = 0x1000, scoped, tag = 'output window, operand 1, single buffered']
    #allocation5 [shape = 's32[1]{0}', space=sflag, size = 0x4, scoped, tag = 'scoped memory for tpu_custom_call.1']
    %11 = vsyncpa [#allocation3], 0
    %12 = vsyncpa [#allocation5], 0
    // Predicated region
    $region2: #{tpu_custom_call.1} parent=1 // pred_check
      _
    $region3: #{tpu_custom_call.1} parent=1 // pred_check_branch
      %14 = sbr.rel (0) target = $region5
    $region4: #{tpu_custom_call.1} parent=1 // pred_region
      _
    $region5: #{tpu_custom_call.1} parent=1 // pred_fallthru
      _
    // Predicated region
    $region6: #{tpu_custom_call.1} parent=1 // pred_check
      _
    $region7: #{tpu_custom_call.1} parent=1 // pred_check_branch
      %16 = sbr.rel (0) target = $region9
    $region8: #{tpu_custom_call.1} parent=1 // pred_region
      _
    $region9: #{tpu_custom_call.1} parent=1 // pred_fallthru
      _
    // Predicated region
    $region10: #{tpu_custom_call.1} parent=1 // pred_check
      _
    $region11: #{tpu_custom_call.1} parent=1 // pred_check_branch
      %18 = sbr.rel (0) target = $region13
    $region12: #{tpu_custom_call.1} parent=1 // pred_region
      _
    $region13: #{tpu_custom_call.1} parent=1 // pred_fallthru
      _
    // Predicated region
    $region14: #{tpu_custom_call.1} parent=1 // pred_check
      _
    $region15: #{tpu_custom_call.1} parent=1 // pred_check_branch
      %20 = sbr.rel (0) target = $region17
    $region16: #{tpu_custom_call.1} parent=1 // pred_region
      _
    $region17: #{tpu_custom_call.1} parent=1 // pred_fallthru
      _
    %v22 = vld [vmem:[%s0] sm:$0xf]
    %v23 = vld [vmem:[%s1] sm:$0xf]
    %v24 = vld [vmem:[%s1 + $0x4] sm:$0xf]
    %v25 = vld [vmem:[%s1 + $0x8] sm:$0xf]
    %v26 = vld [vmem:[%s1 + $0xc] sm:$0xf]
    %v27 = vld [vmem:[%s1 + $0x10] sm:$0xf]
    %v28 = vld [vmem:[%s1 + $0x14] sm:$0xf]
    %v29 = vld [vmem:[%s1 + $0x18] sm:$0xf]
    %v30 = vld [vmem:[%s1 + $0x1c] sm:$0xf]
    %v31 = vld [vmem:[%s1 + $0x20] sm:$0xf]
    %v32 = vld [vmem:[%s1 + $0x24] sm:$0xf]
    %v33 = vld [vmem:[%s1 + $0x28] sm:$0xf]
    %v34 = vld [vmem:[%s1 + $0x2c] sm:$0xf]
    %v35 = vld [vmem:[%s1 + $0x30] sm:$0xf]
    %v36 = vld [vmem:[%s1 + $0x34] sm:$0xf]
    %v37 = vld [vmem:[%s1 + $0x38] sm:$0xf]
    %v38 = vld [vmem:[%s1 + $0x3c] sm:$0xf]
    %v39 = vld [vmem:[%s2] sm:$0x1]
    %v41 = vlaneseq
    %v42 = vshrl.u32 %v41, 7
    %v43 = vsub.s32 0, %v42
    %v44 = vrot.slane %v39, %v43
    %v62 = vunpack.c.l.b16 %v23
    %v63 = vunpack.c.l.b16 %v24
    %v64 = vunpack.c.l.b16 %v25
    %v65 = vunpack.c.l.b16 %v26
    %v66 = vunpack.c.l.b16 %v27
    %v67 = vunpack.c.l.b16 %v28
    %v68 = vunpack.c.l.b16 %v29
    %v69 = vunpack.c.l.b16 %v30
    %v70 = vunpack.c.l.b16 %v31
    %v71 = vunpack.c.l.b16 %v32
    %v72 = vunpack.c.l.b16 %v33
    %v73 = vunpack.c.l.b16 %v34
    %v74 = vunpack.c.l.b16 %v35
    %v75 = vunpack.c.l.b16 %v36
    %v76 = vunpack.c.l.b16 %v37
    %v77 = vunpack.c.l.b16 %v38
    %v78 = vpack.c.b16 %v63, %v62
    %v79 = vpack.c.b16 %v65, %v64
    %v80 = vpack.c.b16 %v67, %v66
    %v81 = vpack.c.b16 %v69, %v68
    %v82 = vpack.c.b16 %v71, %v70
    %v83 = vpack.c.b16 %v73, %v72
    %v84 = vpack.c.b16 %v75, %v74
    %v85 = vpack.c.b16 %v77, %v76
    %94 = vmatprep.subr.bf16.mxu0 0
    %95 = vmatpush1.bf16.msra.mxu0 %v85
    %96 = vmatprep.subr.bf16.mxu0 0
    %97 = vmatpush1.bf16.msra.mxu0 %v84
    %98 = vmatprep.subr.bf16.mxu0 0
    %99 = vmatpush1.bf16.msra.mxu0 %v83
    %100 = vmatprep.subr.bf16.mxu0 0
    %101 = vmatpush1.bf16.msra.mxu0 %v82
    %102 = vmatprep.subr.bf16.mxu0 0
    %103 = vmatpush1.bf16.msra.mxu0 %v81
    %104 = vmatprep.subr.bf16.mxu0 0
    %105 = vmatpush1.bf16.msra.mxu0 %v80
    %106 = vmatprep.subr.bf16.mxu0 0
    %107 = vmatpush1.bf16.msra.mxu0 %v79
    %108 = vmatprep.subr.bf16.mxu0 0
    %109 = vmatpush1.bf16.msra.mxu0 %v78
    %110 = vmatprep.subr.bf16.mxu0 0
    %111 = vmatpush2.bf16.msra.mxu0 0
    %112 = vmatprep.subr.bf16.mxu0 0
    %113 = vmatpush2.bf16.msra.mxu0 0
    %114 = vmatprep.subr.bf16.mxu0 0
    %115 = vmatpush2.bf16.msra.mxu0 0
    %116 = vmatprep.subr.bf16.mxu0 0
    %117 = vmatpush2.bf16.msra.mxu0 0
    %118 = vmatprep.subr.bf16.mxu0 0
    %119 = vmatpush2.bf16.msra.mxu0 0
    %120 = vmatprep.subr.bf16.mxu0 0
    %121 = vmatpush2.bf16.msra.mxu0 0
    %122 = vmatprep.subr.bf16.mxu0 0
    %123 = vmatpush2.bf16.msra.mxu0 0
    %124 = vmatprep.subr.bf16.mxu0 0
    %125 = vmatpush2.bf16.msra.mxu0 0
    %126 = vmatprep.mubr.bf16.mxu0 0
    %127 = vmatmul.mubr.bf16.gmra.mxu0 %v22
    %v128 = vpop.f32.mrf.mxu0
    %v129 = vadd.f32 %v44, %v128
    %v130 = vpop.f32.mrf.mxu0
    %v131 = vpop.f32.mrf.mxu0
    %v132 = vpop.f32.mrf.mxu0
    %133 = vdwg.mxu0
    %s134 = scalar_lea.vmem %s1, 64
    %v135 = vld [vmem:[%s134] sm:$0xf]
    %v136 = vld [vmem:[%s134 + $0x4] sm:$0xf]
    %v137 = vld [vmem:[%s134 + $0x8] sm:$0xf]
    %v138 = vld [vmem:[%s134 + $0xc] sm:$0xf]
    %v139 = vld [vmem:[%s134 + $0x10] sm:$0xf]
    %v140 = vld [vmem:[%s134 + $0x14] sm:$0xf]
    %v141 = vld [vmem:[%s134 + $0x18] sm:$0xf]
    %v142 = vld [vmem:[%s134 + $0x1c] sm:$0xf]
    %v143 = vld [vmem:[%s134 + $0x20] sm:$0xf]
    %v144 = vld [vmem:[%s134 + $0x24] sm:$0xf]
    %v145 = vld [vmem:[%s134 + $0x28] sm:$0xf]
    %v146 = vld [vmem:[%s134 + $0x2c] sm:$0xf]
    %v147 = vld [vmem:[%s134 + $0x30] sm:$0xf]
    %v148 = vld [vmem:[%s134 + $0x34] sm:$0xf]
    %v149 = vld [vmem:[%s134 + $0x38] sm:$0xf]
    %v150 = vld [vmem:[%s134 + $0x3c] sm:$0xf]
    %s151 = scalar_lea.vmem %s2, 1
    %v152 = vld [vmem:[%s151] sm:$0x1]
    %v154 = vlaneseq
    %v155 = vshrl.u32 %v154, 7
    %v156 = vsub.s32 0, %v155
    %v157 = vrot.slane %v152, %v156
    %v175 = vunpack.c.l.b16 %v135
    %v176 = vunpack.c.l.b16 %v136
    %v177 = vunpack.c.l.b16 %v137
    %v178 = vunpack.c.l.b16 %v138
    %v179 = vunpack.c.l.b16 %v139
    %v180 = vunpack.c.l.b16 %v140
    %v181 = vunpack.c.l.b16 %v141
    %v182 = vunpack.c.l.b16 %v142
    %v183 = vunpack.c.l.b16 %v143
    %v184 = vunpack.c.l.b16 %v144
    %v185 = vunpack.c.l.b16 %v145
    %v186 = vunpack.c.l.b16 %v146
    %v187 = vunpack.c.l.b16 %v147
    %v188 = vunpack.c.l.b16 %v148
    %v189 = vunpack.c.l.b16 %v149
    %v190 = vunpack.c.l.b16 %v150
    %v191 = vpack.c.b16 %v176, %v175
    %v192 = vpack.c.b16 %v178, %v177
    %v193 = vpack.c.b16 %v180, %v179
    %v194 = vpack.c.b16 %v182, %v181
    %v195 = vpack.c.b16 %v184, %v183
    %v196 = vpack.c.b16 %v186, %v185
    %v197 = vpack.c.b16 %v188, %v187
    %v198 = vpack.c.b16 %v190, %v189
    %207 = vmatprep.subr.bf16.mxu0 0
    %208 = vmatpush1.bf16.msra.mxu0 %v198
    %209 = vmatprep.subr.bf16.mxu0 0
    %210 = vmatpush1.bf16.msra.mxu0 %v197
    %211 = vmatprep.subr.bf16.mxu0 0
    %212 = vmatpush1.bf16.msra.mxu0 %v196
    %213 = vmatprep.subr.bf16.mxu0 0
    %214 = vmatpush1.bf16.msra.mxu0 %v195
    %215 = vmatprep.subr.bf16.mxu0 0
    %216 = vmatpush1.bf16.msra.mxu0 %v194
    %217 = vmatprep.subr.bf16.mxu0 0
    %218 = vmatpush1.bf16.msra.mxu0 %v193
    %219 = vmatprep.subr.bf16.mxu0 0
    %220 = vmatpush1.bf16.msra.mxu0 %v192
    %221 = vmatprep.subr.bf16.mxu0 0
    %222 = vmatpush1.bf16.msra.mxu0 %v191
    %223 = vmatprep.subr.bf16.mxu0 0
    %224 = vmatpush2.bf16.msra.mxu0 0
    %225 = vmatprep.subr.bf16.mxu0 0
    %226 = vmatpush2.bf16.msra.mxu0 0
    %227 = vmatprep.subr.bf16.mxu0 0
    %228 = vmatpush2.bf16.msra.mxu0 0
    %229 = vmatprep.subr.bf16.mxu0 0
    %230 = vmatpush2.bf16.msra.mxu0 0
    %231 = vmatprep.subr.bf16.mxu0 0
    %232 = vmatpush2.bf16.msra.mxu0 0
    %233 = vmatprep.subr.bf16.mxu0 0
    %234 = vmatpush2.bf16.msra.mxu0 0
    %235 = vmatprep.subr.bf16.mxu0 0
    %236 = vmatpush2.bf16.msra.mxu0 0
    %237 = vmatprep.subr.bf16.mxu0 0
    %238 = vmatpush2.bf16.msra.mxu0 0
    %239 = vmatprep.mubr.bf16.mxu0 0
    %240 = vmatmul.mubr.bf16.gmra.mxu0 %v22
    %v241 = vpop.f32.mrf.mxu0
    %v242 = vadd.f32 %v157, %v241
    %v243 = vpop.f32.mrf.mxu0
    %v244 = vpop.f32.mrf.mxu0
    %v245 = vpop.f32.mrf.mxu0
    %246 = vdwg.mxu0
    %v247 = vxor.u32 %v242, 2147483648
    %v248 = vmul.f32 %v247, 1.442695
    %v249 = vpow.pop %v248
    %v250 = vadd.f32 %v249, 1.0
    %v251 = vrcp.pop %v250
    %v252 = vmul.f32 1.0, %v251
    %v253 = vmul.f32 %v129, %v252
    %v254 = vmul.f32 %v253, 0.5
    %v255 = vmul.f32 %v254, 1.442695
    %v256 = vpow.pop %v255
    %v257 = vld [vmem:[%s3] sm:$0xff]
    %259 = vrot.lane.b32.xlu0 %v257, 32
    %v260 = vpop.permute.xlu0 %259
    %v262 = vmul.f32 %v256, %v260
    %264 = vrot.lane.b32.xlu0 %v262, 96
    %v265 = vpop.permute.xlu0 %264
    %v267 = vadd.f32 %v253, %v265
    %vm268 = vcmask 261120
    %269 = vst.msk [vmem:[#allocation2] sm:$0xff] %vm268, %v267
    %vm270 = vcmask 523264
    %271 = vst.msk [vmem:[#allocation4] sm:$0xff] %vm270, %v253
    // Predicated region
    $region18: #{tpu_custom_call.1} parent=1 // pred_check
      _
    $region19: #{tpu_custom_call.1} parent=1 // pred_check_branch
      %273 = sbr.rel (0) target = $region21
    $region20: #{tpu_custom_call.1} parent=1 // pred_region
      %s275 = ssub.s32 128, 128
      %276 = vsyncadd [#allocation3], %s275
      %s278 = sshll.u32 [#allocation2], 4
      %s279 = int_to_ptr.vmem [resolvable:$true] %s278
      %281 = dma.vmem_to_hbm [thread:$0]  %s279, 128, %s4, [#allocation3]
    $region21: #{tpu_custom_call.1} parent=1 // pred_fallthru
      _
    // Predicated region
    $region22: #{tpu_custom_call.1} parent=1 // pred_check
      _
    $region23: #{tpu_custom_call.1} parent=1 // pred_check_branch
      %283 = sbr.rel (0) target = $region25
    $region24: #{tpu_custom_call.1} parent=1 // pred_region
      %s285 = ssub.s32 128, 128
      %286 = vsyncadd [#allocation5], %s285
      %s288 = sshll.u32 [#allocation4], 4
      %s289 = int_to_ptr.vmem [resolvable:$true] %s288
      %291 = dma.vmem_to_hbm [thread:$0]  %s289, 128, %s5, [#allocation5]
    $region25: #{tpu_custom_call.1} parent=1 // pred_fallthru
      _
    // Predicated region
    $region26: #{tpu_custom_call.1} parent=1 // pred_check
      _
    $region27: #{tpu_custom_call.1} parent=1 // pred_check_branch
      %293 = sbr.rel (0) target = $region29
    $region28: #{tpu_custom_call.1} parent=1 // pred_region
      %294 = dma.done [#allocation3], 128
    $region29: #{tpu_custom_call.1} parent=1 // pred_fallthru
      _
    // Predicated region
    $region30: #{tpu_custom_call.1} parent=1 // pred_check
      _
    $region31: #{tpu_custom_call.1} parent=1 // pred_check_branch
      %296 = sbr.rel (0) target = $region33
    $region32: #{tpu_custom_call.1} parent=1 // pred_region
      %297 = dma.done [#allocation5], 128
    $region33: #{tpu_custom_call.1} parent=1 // pred_fallthru
      _
    %298 = vsyncpa [#allocation3], 1
    %299 = vsyncpa [#allocation5], 1

</llo_original>
